<compile_context>
chip_gen: v5e
topology: v5e:2x2
jax: 0.10.0
libtpu: 0.0.40
codegen_flags: <defaults>
</compile_context>

<pallas_src>
import math
import jax
import jax.numpy as jnp
from jax.experimental import pallas as pl
from jax.experimental.pallas import tpu as pltpu


def _encoder_birnn_kernel(emb_ref, w_in_ref, w_rec_ref, b_ref, out_ref, hid_ref):
    """Fused bidirectional vanilla-RNN forward (single invocation, no grid).

    emb_ref:   (T, B, E)  embedded inputs, time order
    w_in_ref:  (E, 2H)    [ W_ih_f^T | W_ih_b^T ]
    w_rec_ref: (2H, 2H)   blockdiag(W_hh_f^T, W_hh_b^T)
    b_ref:     (1, 2H)    [ b_ih_f + b_hh_f | b_ih_b + b_hh_b ]
    out_ref:   (T, B, 2H) outputs, forward half | backward half
    hid_ref:   (2, B, H)  final hidden states (forward, backward)
    """
    T, B, H2 = out_ref.shape
    H = H2 // 2

    # Weights cast once to bf16 for the MXU; bias stays f32 for the accumulate.
    w_in = w_in_ref[...].astype(jnp.bfloat16)      # (E, 2H)
    w_rec = w_rec_ref[...].astype(jnp.bfloat16)    # (2H, 2H)
    bias = b_ref[...]                              # (1, 2H) f32

    # --- Prologue (off the serial chain): hoist ALL input projections. ----------------
    # proj[t][:, :H] = emb[t] @ W_ih_f^T ; proj[t][:, H:] = emb[t] @ W_ih_b^T  (time order)
    proj = []
    for t in range(T):
        e_t = emb_ref[t].astype(jnp.bfloat16)      # (B, E), leading-dim (tile-aligned) load
        proj.append(jnp.dot(e_t, w_in, preferred_element_type=jnp.float32))
    # Scan-step pairing: step s consumes fwd input at time s and bwd input at time T-1-s.
    xs = [
        jnp.concatenate([proj[s][:, :H], proj[T - 1 - s][:, H:]], axis=-1) + bias
        for s in range(T)
    ]

    # --- Serial recurrence (critical path): one bf16 MXU push + one tanh per step. -----
    h_cat = jnp.tanh(xs[0])                        # h0 == 0 -> no matmul on the first step
    hist = [h_cat]
    for s in range(1, T):
        rec = jnp.dot(h_cat.astype(jnp.bfloat16), w_rec,
                      preferred_element_type=jnp.float32)
        h_cat = jnp.tanh(xs[s] + rec)
        hist.append(h_cat)

    # --- Epilogue: one bulk output store (time-reversal of bwd half done at trace time). -
    out_rows = [
        jnp.concatenate([hist[t][:, :H], hist[T - 1 - t][:, H:]], axis=-1)
        for t in range(T)
    ]
    out_ref[...] = jnp.stack(out_rows, axis=0)
    hid_ref[...] = jnp.stack([h_cat[:, :H], h_cat[:, H:]], axis=0)


def _block_diag(a, b):
    za = jnp.zeros((a.shape[0], b.shape[1]), a.dtype)
    zb = jnp.zeros((b.shape[0], a.shape[1]), b.dtype)
    return jnp.concatenate(
        [jnp.concatenate([a, za], axis=1), jnp.concatenate([zb, b], axis=1)], axis=0)


def bidirectional_rnn_pallas(embedded, params):
    """embedded: (T, B, E) float32.  Returns (outputs (T,B,2H), hidden (2,B,H))."""
    T, B, E = embedded.shape
    H = params["whh_f"].shape[0]

    w_in = jnp.concatenate([params["wih_f"], params["wih_b"]], axis=1)   # (E, 2H)
    w_rec = _block_diag(params["whh_f"], params["whh_b"])                # (2H, 2H)
    b_cat = jnp.concatenate([params["b_f"], params["b_b"]], axis=1)      # (1, 2H)

    vmem = pl.BlockSpec(memory_space=pltpu.MemorySpace.VMEM)
    outputs, hidden = pl.pallas_call(
        _encoder_birnn_kernel,
        out_shape=(
            jax.ShapeDtypeStruct((T, B, 2 * H), jnp.float32),
            jax.ShapeDtypeStruct((2, B, H), jnp.float32),
        ),
        in_specs=[vmem, vmem, vmem, vmem],
        out_specs=(vmem, vmem),
    )(embedded, w_in, w_rec, b_cat)
    return outputs, hidden


def encoder_forward(src, emb_table, params):
    """src: (T, B) int32 token ids. Returns (outputs, hidden) like the PyTorch Encoder."""
    # Embedding lookup (single XLA gather) + identity dropout stay in the wrapper;
    # reverse/concat/reshape prep was fused into the kernel.
    embedded = jnp.take(emb_table, src, axis=0).astype(jnp.float32)      # (T, B, E)
    return bidirectional_rnn_pallas(embedded, params)


def init_params(key, input_dim, enc_embed_dim, enc_hid_dim):
    """Deterministic init mimicking PyTorch defaults (Embedding ~ N(0,1), RNN ~ U(+-1/sqrt(H)))."""
    ks = jax.random.split(key, 9)
    H, E = enc_hid_dim, enc_embed_dim
    bound = 1.0 / math.sqrt(H)
    u = lambda k, shape: jax.random.uniform(k, shape, jnp.float32, -bound, bound)

    emb_table = jax.random.normal(ks[0], (input_dim, E), jnp.float32)

    # PyTorch stores W_ih (H, E) / W_hh (H, H); pre-transpose so the kernel does x @ W.
    wih_f = u(ks[1], (H, E)).T
    whh_f = u(ks[2], (H, H)).T
    b_f = (u(ks[3], (H,)) + u(ks[4], (H,))).reshape(1, H)    # b_ih + b_hh
    wih_b = u(ks[5], (H, E)).T
    whh_b = u(ks[6], (H, H)).T
    b_b = (u(ks[7], (H,)) + u(ks[8], (H,))).reshape(1, H)

    params = dict(wih_f=wih_f, whh_f=whh_f, b_f=b_f,
                  wih_b=wih_b, whh_b=whh_b, b_b=b_b)
    return emb_table, params


def _rnn_ref_one_direction(emb, wih, whh, b):
    def step(h, x):
        h_new = jnp.tanh(x @ wih + h @ whh + b)
        return h_new, h_new
    h0 = jnp.zeros((emb.shape[1], whh.shape[0]), jnp.float32)
    _, outs = jax.lax.scan(step, h0, emb)
    return outs


def encoder_reference(src, emb_table, params):
    emb = jnp.take(emb_table, src, axis=0).astype(jnp.float32)
    out_f = _rnn_ref_one_direction(emb, params["wih_f"], params["whh_f"], params["b_f"])
    out_b = _rnn_ref_one_direction(emb[::-1], params["wih_b"], params["whh_b"], params["b_b"])[::-1]
    outputs = jnp.concatenate([out_f, out_b], axis=-1)
    hidden = jnp.stack([out_f[-1], out_b[0]], axis=0)
    return outputs, hidden


if __name__ == "__main__":
    INPUT_DIM = 50       # vocab size
    ENC_EMBED_DIM = 32
    ENC_HID_DIM = 32
    T, B = 8, 4          # seq_len, batch

    key = jax.random.PRNGKey(0)
    k_param, k_src = jax.random.split(key)
    emb_table, params = init_params(k_param, INPUT_DIM, ENC_EMBED_DIM, ENC_HID_DIM)
    src = jax.random.randint(k_src, (T, B), 0, INPUT_DIM, dtype=jnp.int32)

    outputs, hidden = jax.jit(encoder_forward)(src, emb_table, params)
    outputs = jax.block_until_ready(outputs)
    hidden = jax.block_until_ready(hidden)

    ref_out, ref_hid = encoder_reference(src, emb_table, params)
    assert outputs.shape == (T, B, 2 * ENC_HID_DIM)
    assert hidden.shape == (2, B, ENC_HID_DIM)
    # Tolerance relaxed vs. the pure-f32 version: MXU operands are bf16 (f32 accumulate).
    assert jnp.allclose(outputs, ref_out, atol=3e-2, rtol=1e-2)
    assert jnp.allclose(hidden, ref_hid, atol=3e-2, rtol=1e-2)

    print("KERNEL_OK")
</pallas_src>

<mosaic_0001>
module attributes {stable_mosaic.version = 11 : i64} {
  func.func @_encoder_birnn_kernel(%arg0: memref<8x4x32xf32, #tpu.memory_space<vmem>>, %arg1: memref<32x64xf32, #tpu.memory_space<vmem>>, %arg2: memref<64x64xf32, #tpu.memory_space<vmem>>, %arg3: memref<1x64xf32, #tpu.memory_space<vmem>>, %arg4: memref<8x4x64xf32, #tpu.memory_space<vmem>>, %arg5: memref<2x4x32xf32, #tpu.memory_space<vmem>>) attributes {dimension_semantics = [], scalar_prefetch = 0 : i64, scratch_operands = 0 : i64, tpu.core_type = #tpu.core_type<tc>} {
    %c0 = arith.constant 0 : index
    %c0_0 = arith.constant 0 : index
    %0 = vector.load %arg1[%c0, %c0_0] : memref<32x64xf32, #tpu.memory_space<vmem>>, vector<32x64xf32>
    %1 = arith.truncf %0 : vector<32x64xf32> to vector<32x64xbf16>
    %c0_1 = arith.constant 0 : index
    %c0_2 = arith.constant 0 : index
    %2 = vector.load %arg2[%c0_1, %c0_2] : memref<64x64xf32, #tpu.memory_space<vmem>>, vector<64x64xf32>
    %3 = arith.truncf %2 : vector<64x64xf32> to vector<64x64xbf16>
    %c0_3 = arith.constant 0 : index
    %c0_4 = arith.constant 0 : index
    %4 = vector.load %arg3[%c0_3, %c0_4] : memref<1x64xf32, #tpu.memory_space<vmem>>, vector<1x64xf32>
    %c0_5 = arith.constant 0 : index
    %c0_6 = arith.constant 0 : index
    %c0_7 = arith.constant 0 : index
    %5 = vector.load %arg0[%c0_5, %c0_6, %c0_7] : memref<8x4x32xf32, #tpu.memory_space<vmem>>, vector<1x4x32xf32>
    %6 = vector.shape_cast %5 : vector<1x4x32xf32> to vector<4x32xf32>
    %7 = arith.truncf %6 : vector<4x32xf32> to vector<4x32xbf16>
    %cst = arith.constant dense<0.000000e+00> : vector<4x64xf32>
    %8 = tpu.matmul %7, %1, %cst {dimension_numbers = #tpu.dot_dimension_numbers<[1], [0], [0], [1], [0, 0, 1, 1], [], []>} : vector<4x32xbf16>, vector<32x64xbf16>, vector<4x64xf32> -> vector<4x64xf32>
    %c1 = arith.constant 1 : index
    %c0_8 = arith.constant 0 : index
    %c0_9 = arith.constant 0 : index
    %9 = vector.load %arg0[%c1, %c0_8, %c0_9] : memref<8x4x32xf32, #tpu.memory_space<vmem>>, vector<1x4x32xf32>
    %10 = vector.shape_cast %9 : vector<1x4x32xf32> to vector<4x32xf32>
    %11 = arith.truncf %10 : vector<4x32xf32> to vector<4x32xbf16>
    %cst_10 = arith.constant dense<0.000000e+00> : vector<4x64xf32>
    %12 = tpu.matmul %11, %1, %cst_10 {dimension_numbers = #tpu.dot_dimension_numbers<[1], [0], [0], [1], [0, 0, 1, 1], [], []>} : vector<4x32xbf16>, vector<32x64xbf16>, vector<4x64xf32> -> vector<4x64xf32>
    %c2 = arith.constant 2 : index
    %c0_11 = arith.constant 0 : index
    %c0_12 = arith.constant 0 : index
    %13 = vector.load %arg0[%c2, %c0_11, %c0_12] : memref<8x4x32xf32, #tpu.memory_space<vmem>>, vector<1x4x32xf32>
    %14 = vector.shape_cast %13 : vector<1x4x32xf32> to vector<4x32xf32>
    %15 = arith.truncf %14 : vector<4x32xf32> to vector<4x32xbf16>
    %cst_13 = arith.constant dense<0.000000e+00> : vector<4x64xf32>
    %16 = tpu.matmul %15, %1, %cst_13 {dimension_numbers = #tpu.dot_dimension_numbers<[1], [0], [0], [1], [0, 0, 1, 1], [], []>} : vector<4x32xbf16>, vector<32x64xbf16>, vector<4x64xf32> -> vector<4x64xf32>
    %c3 = arith.constant 3 : index
    %c0_14 = arith.constant 0 : index
    %c0_15 = arith.constant 0 : index
    %17 = vector.load %arg0[%c3, %c0_14, %c0_15] : memref<8x4x32xf32, #tpu.memory_space<vmem>>, vector<1x4x32xf32>
    %18 = vector.shape_cast %17 : vector<1x4x32xf32> to vector<4x32xf32>
    %19 = arith.truncf %18 : vector<4x32xf32> to vector<4x32xbf16>
    %cst_16 = arith.constant dense<0.000000e+00> : vector<4x64xf32>
    %20 = tpu.matmul %19, %1, %cst_16 {dimension_numbers = #tpu.dot_dimension_numbers<[1], [0], [0], [1], [0, 0, 1, 1], [], []>} : vector<4x32xbf16>, vector<32x64xbf16>, vector<4x64xf32> -> vector<4x64xf32>
    %c4 = arith.constant 4 : index
    %c0_17 = arith.constant 0 : index
    %c0_18 = arith.constant 0 : index
    %21 = vector.load %arg0[%c4, %c0_17, %c0_18] : memref<8x4x32xf32, #tpu.memory_space<vmem>>, vector<1x4x32xf32>
    %22 = vector.shape_cast %21 : vector<1x4x32xf32> to vector<4x32xf32>
    %23 = arith.truncf %22 : vector<4x32xf32> to vector<4x32xbf16>
    %cst_19 = arith.constant dense<0.000000e+00> : vector<4x64xf32>
    %24 = tpu.matmul %23, %1, %cst_19 {dimension_numbers = #tpu.dot_dimension_numbers<[1], [0], [0], [1], [0, 0, 1, 1], [], []>} : vector<4x32xbf16>, vector<32x64xbf16>, vector<4x64xf32> -> vector<4x64xf32>
    %c5 = arith.constant 5 : index
    %c0_20 = arith.constant 0 : index
    %c0_21 = arith.constant 0 : index
    %25 = vector.load %arg0[%c5, %c0_20, %c0_21] : memref<8x4x32xf32, #tpu.memory_space<vmem>>, vector<1x4x32xf32>
    %26 = vector.shape_cast %25 : vector<1x4x32xf32> to vector<4x32xf32>
    %27 = arith.truncf %26 : vector<4x32xf32> to vector<4x32xbf16>
    %cst_22 = arith.constant dense<0.000000e+00> : vector<4x64xf32>
    %28 = tpu.matmul %27, %1, %cst_22 {dimension_numbers = #tpu.dot_dimension_numbers<[1], [0], [0], [1], [0, 0, 1, 1], [], []>} : vector<4x32xbf16>, vector<32x64xbf16>, vector<4x64xf32> -> vector<4x64xf32>
    %c6 = arith.constant 6 : index
    %c0_23 = arith.constant 0 : index
    %c0_24 = arith.constant 0 : index
    %29 = vector.load %arg0[%c6, %c0_23, %c0_24] : memref<8x4x32xf32, #tpu.memory_space<vmem>>, vector<1x4x32xf32>
    %30 = vector.shape_cast %29 : vector<1x4x32xf32> to vector<4x32xf32>
    %31 = arith.truncf %30 : vector<4x32xf32> to vector<4x32xbf16>
    %cst_25 = arith.constant dense<0.000000e+00> : vector<4x64xf32>
    %32 = tpu.matmul %31, %1, %cst_25 {dimension_numbers = #tpu.dot_dimension_numbers<[1], [0], [0], [1], [0, 0, 1, 1], [], []>} : vector<4x32xbf16>, vector<32x64xbf16>, vector<4x64xf32> -> vector<4x64xf32>
    %c7 = arith.constant 7 : index
    %c0_26 = arith.constant 0 : index
    %c0_27 = arith.constant 0 : index
    %33 = vector.load %arg0[%c7, %c0_26, %c0_27] : memref<8x4x32xf32, #tpu.memory_space<vmem>>, vector<1x4x32xf32>
    %34 = vector.shape_cast %33 : vector<1x4x32xf32> to vector<4x32xf32>
    %35 = arith.truncf %34 : vector<4x32xf32> to vector<4x32xbf16>
    %cst_28 = arith.constant dense<0.000000e+00> : vector<4x64xf32>
    %36 = tpu.matmul %35, %1, %cst_28 {dimension_numbers = #tpu.dot_dimension_numbers<[1], [0], [0], [1], [0, 0, 1, 1], [], []>} : vector<4x32xbf16>, vector<32x64xbf16>, vector<4x64xf32> -> vector<4x64xf32>
    %37 = vector.extract_strided_slice %8 {offsets = [0, 0], sizes = [4, 32], strides = [1, 1]} : vector<4x64xf32> to vector<4x32xf32>
    %38 = vector.extract_strided_slice %36 {offsets = [0, 32], sizes = [4, 32], strides = [1, 1]} : vector<4x64xf32> to vector<4x32xf32>
    %39 = tpu.concatenate %37, %38 in 1 : vector<4x32xf32>, vector<4x32xf32> -> vector<4x64xf32>
    %40 = vector.broadcast %4 : vector<1x64xf32> to vector<4x64xf32>
    %41 = arith.addf %39, %40 : vector<4x64xf32>
    %42 = vector.extract_strided_slice %12 {offsets = [0, 0], sizes = [4, 32], strides = [1, 1]} : vector<4x64xf32> to vector<4x32xf32>
    %43 = vector.extract_strided_slice %32 {offsets = [0, 32], sizes = [4, 32], strides = [1, 1]} : vector<4x64xf32> to vector<4x32xf32>
    %44 = tpu.concatenate %42, %43 in 1 : vector<4x32xf32>, vector<4x32xf32> -> vector<4x64xf32>
    %45 = vector.broadcast %4 : vector<1x64xf32> to vector<4x64xf32>
    %46 = arith.addf %44, %45 : vector<4x64xf32>
    %47 = vector.extract_strided_slice %16 {offsets = [0, 0], sizes = [4, 32], strides = [1, 1]} : vector<4x64xf32> to vector<4x32xf32>
    %48 = vector.extract_strided_slice %28 {offsets = [0, 32], sizes = [4, 32], strides = [1, 1]} : vector<4x64xf32> to vector<4x32xf32>
    %49 = tpu.concatenate %47, %48 in 1 : vector<4x32xf32>, vector<4x32xf32> -> vector<4x64xf32>
    %50 = vector.broadcast %4 : vector<1x64xf32> to vector<4x64xf32>
    %51 = arith.addf %49, %50 : vector<4x64xf32>
    %52 = vector.extract_strided_slice %20 {offsets = [0, 0], sizes = [4, 32], strides = [1, 1]} : vector<4x64xf32> to vector<4x32xf32>
    %53 = vector.extract_strided_slice %24 {offsets = [0, 32], sizes = [4, 32], strides = [1, 1]} : vector<4x64xf32> to vector<4x32xf32>
    %54 = tpu.concatenate %52, %53 in 1 : vector<4x32xf32>, vector<4x32xf32> -> vector<4x64xf32>
    %55 = vector.broadcast %4 : vector<1x64xf32> to vector<4x64xf32>
    %56 = arith.addf %54, %55 : vector<4x64xf32>
    %57 = vector.extract_strided_slice %24 {offsets = [0, 0], sizes = [4, 32], strides = [1, 1]} : vector<4x64xf32> to vector<4x32xf32>
    %58 = vector.extract_strided_slice %20 {offsets = [0, 32], sizes = [4, 32], strides = [1, 1]} : vector<4x64xf32> to vector<4x32xf32>
    %59 = tpu.concatenate %57, %58 in 1 : vector<4x32xf32>, vector<4x32xf32> -> vector<4x64xf32>
    %60 = vector.broadcast %4 : vector<1x64xf32> to vector<4x64xf32>
    %61 = arith.addf %59, %60 : vector<4x64xf32>
    %62 = vector.extract_strided_slice %28 {offsets = [0, 0], sizes = [4, 32], strides = [1, 1]} : vector<4x64xf32> to vector<4x32xf32>
    %63 = vector.extract_strided_slice %16 {offsets = [0, 32], sizes = [4, 32], strides = [1, 1]} : vector<4x64xf32> to vector<4x32xf32>
    %64 = tpu.concatenate %62, %63 in 1 : vector<4x32xf32>, vector<4x32xf32> -> vector<4x64xf32>
    %65 = vector.broadcast %4 : vector<1x64xf32> to vector<4x64xf32>
    %66 = arith.addf %64, %65 : vector<4x64xf32>
    %67 = vector.extract_strided_slice %32 {offsets = [0, 0], sizes = [4, 32], strides = [1, 1]} : vector<4x64xf32> to vector<4x32xf32>
    %68 = vector.extract_strided_slice %12 {offsets = [0, 32], sizes = [4, 32], strides = [1, 1]} : vector<4x64xf32> to vector<4x32xf32>
    %69 = tpu.concatenate %67, %68 in 1 : vector<4x32xf32>, vector<4x32xf32> -> vector<4x64xf32>
    %70 = vector.broadcast %4 : vector<1x64xf32> to vector<4x64xf32>
    %71 = arith.addf %69, %70 : vector<4x64xf32>
    %72 = vector.extract_strided_slice %36 {offsets = [0, 0], sizes = [4, 32], strides = [1, 1]} : vector<4x64xf32> to vector<4x32xf32>
    %73 = vector.extract_strided_slice %8 {offsets = [0, 32], sizes = [4, 32], strides = [1, 1]} : vector<4x64xf32> to vector<4x32xf32>
    %74 = tpu.concatenate %72, %73 in 1 : vector<4x32xf32>, vector<4x32xf32> -> vector<4x64xf32>
    %75 = vector.broadcast %4 : vector<1x64xf32> to vector<4x64xf32>
    %76 = arith.addf %74, %75 : vector<4x64xf32>
    %77 = math.tanh %41 : vector<4x64xf32>
    %78 = arith.truncf %77 : vector<4x64xf32> to vector<4x64xbf16>
    %cst_29 = arith.constant dense<0.000000e+00> : vector<4x64xf32>
    %79 = tpu.matmul %78, %3, %cst_29 {dimension_numbers = #tpu.dot_dimension_numbers<[1], [0], [0], [1], [0, 0, 1, 1], [], []>} : vector<4x64xbf16>, vector<64x64xbf16>, vector<4x64xf32> -> vector<4x64xf32>
    %80 = arith.addf %46, %79 : vector<4x64xf32>
    %81 = math.tanh %80 : vector<4x64xf32>
    %82 = arith.truncf %81 : vector<4x64xf32> to vector<4x64xbf16>
    %cst_30 = arith.constant dense<0.000000e+00> : vector<4x64xf32>
    %83 = tpu.matmul %82, %3, %cst_30 {dimension_numbers = #tpu.dot_dimension_numbers<[1], [0], [0], [1], [0, 0, 1, 1], [], []>} : vector<4x64xbf16>, vector<64x64xbf16>, vector<4x64xf32> -> vector<4x64xf32>
    %84 = arith.addf %51, %83 : vector<4x64xf32>
    %85 = math.tanh %84 : vector<4x64xf32>
    %86 = arith.truncf %85 : vector<4x64xf32> to vector<4x64xbf16>
    %cst_31 = arith.constant dense<0.000000e+00> : vector<4x64xf32>
    %87 = tpu.matmul %86, %3, %cst_31 {dimension_numbers = #tpu.dot_dimension_numbers<[1], [0], [0], [1], [0, 0, 1, 1], [], []>} : vector<4x64xbf16>, vector<64x64xbf16>, vector<4x64xf32> -> vector<4x64xf32>
    %88 = arith.addf %56, %87 : vector<4x64xf32>
    %89 = math.tanh %88 : vector<4x64xf32>
    %90 = arith.truncf %89 : vector<4x64xf32> to vector<4x64xbf16>
    %cst_32 = arith.constant dense<0.000000e+00> : vector<4x64xf32>
    %91 = tpu.matmul %90, %3, %cst_32 {dimension_numbers = #tpu.dot_dimension_numbers<[1], [0], [0], [1], [0, 0, 1, 1], [], []>} : vector<4x64xbf16>, vector<64x64xbf16>, vector<4x64xf32> -> vector<4x64xf32>
    %92 = arith.addf %61, %91 : vector<4x64xf32>
    %93 = math.tanh %92 : vector<4x64xf32>
    %94 = arith.truncf %93 : vector<4x64xf32> to vector<4x64xbf16>
    %cst_33 = arith.constant dense<0.000000e+00> : vector<4x64xf32>
    %95 = tpu.matmul %94, %3, %cst_33 {dimension_numbers = #tpu.dot_dimension_numbers<[1], [0], [0], [1], [0, 0, 1, 1], [], []>} : vector<4x64xbf16>, vector<64x64xbf16>, vector<4x64xf32> -> vector<4x64xf32>
    %96 = arith.addf %66, %95 : vector<4x64xf32>
    %97 = math.tanh %96 : vector<4x64xf32>
    %98 = arith.truncf %97 : vector<4x64xf32> to vector<4x64xbf16>
    %cst_34 = arith.constant dense<0.000000e+00> : vector<4x64xf32>
    %99 = tpu.matmul %98, %3, %cst_34 {dimension_numbers = #tpu.dot_dimension_numbers<[1], [0], [0], [1], [0, 0, 1, 1], [], []>} : vector<4x64xbf16>, vector<64x64xbf16>, vector<4x64xf32> -> vector<4x64xf32>
    %100 = arith.addf %71, %99 : vector<4x64xf32>
    %101 = math.tanh %100 : vector<4x64xf32>
    %102 = arith.truncf %101 : vector<4x64xf32> to vector<4x64xbf16>
    %cst_35 = arith.constant dense<0.000000e+00> : vector<4x64xf32>
    %103 = tpu.matmul %102, %3, %cst_35 {dimension_numbers = #tpu.dot_dimension_numbers<[1], [0], [0], [1], [0, 0, 1, 1], [], []>} : vector<4x64xbf16>, vector<64x64xbf16>, vector<4x64xf32> -> vector<4x64xf32>
    %104 = arith.addf %76, %103 : vector<4x64xf32>
    %105 = math.tanh %104 : vector<4x64xf32>
    %106 = vector.extract_strided_slice %77 {offsets = [0, 0], sizes = [4, 32], strides = [1, 1]} : vector<4x64xf32> to vector<4x32xf32>
    %107 = vector.extract_strided_slice %105 {offsets = [0, 32], sizes = [4, 32], strides = [1, 1]} : vector<4x64xf32> to vector<4x32xf32>
    %108 = tpu.concatenate %106, %107 in 1 : vector<4x32xf32>, vector<4x32xf32> -> vector<4x64xf32>
    %109 = vector.extract_strided_slice %81 {offsets = [0, 0], sizes = [4, 32], strides = [1, 1]} : vector<4x64xf32> to vector<4x32xf32>
    %110 = vector.extract_strided_slice %101 {offsets = [0, 32], sizes = [4, 32], strides = [1, 1]} : vector<4x64xf32> to vector<4x32xf32>
    %111 = tpu.concatenate %109, %110 in 1 : vector<4x32xf32>, vector<4x32xf32> -> vector<4x64xf32>
    %112 = vector.extract_strided_slice %85 {offsets = [0, 0], sizes = [4, 32], strides = [1, 1]} : vector<4x64xf32> to vector<4x32xf32>
    %113 = vector.extract_strided_slice %97 {offsets = [0, 32], sizes = [4, 32], strides = [1, 1]} : vector<4x64xf32> to vector<4x32xf32>
    %114 = tpu.concatenate %112, %113 in 1 : vector<4x32xf32>, vector<4x32xf32> -> vector<4x64xf32>
    %115 = vector.extract_strided_slice %89 {offsets = [0, 0], sizes = [4, 32], strides = [1, 1]} : vector<4x64xf32> to vector<4x32xf32>
    %116 = vector.extract_strided_slice %93 {offsets = [0, 32], sizes = [4, 32], strides = [1, 1]} : vector<4x64xf32> to vector<4x32xf32>
    %117 = tpu.concatenate %115, %116 in 1 : vector<4x32xf32>, vector<4x32xf32> -> vector<4x64xf32>
    %118 = vector.extract_strided_slice %93 {offsets = [0, 0], sizes = [4, 32], strides = [1, 1]} : vector<4x64xf32> to vector<4x32xf32>
    %119 = vector.extract_strided_slice %89 {offsets = [0, 32], sizes = [4, 32], strides = [1, 1]} : vector<4x64xf32> to vector<4x32xf32>
    %120 = tpu.concatenate %118, %119 in 1 : vector<4x32xf32>, vector<4x32xf32> -> vector<4x64xf32>
    %121 = vector.extract_strided_slice %97 {offsets = [0, 0], sizes = [4, 32], strides = [1, 1]} : vector<4x64xf32> to vector<4x32xf32>
    %122 = vector.extract_strided_slice %85 {offsets = [0, 32], sizes = [4, 32], strides = [1, 1]} : vector<4x64xf32> to vector<4x32xf32>
    %123 = tpu.concatenate %121, %122 in 1 : vector<4x32xf32>, vector<4x32xf32> -> vector<4x64xf32>
    %124 = vector.extract_strided_slice %101 {offsets = [0, 0], sizes = [4, 32], strides = [1, 1]} : vector<4x64xf32> to vector<4x32xf32>
    %125 = vector.extract_strided_slice %81 {offsets = [0, 32], sizes = [4, 32], strides = [1, 1]} : vector<4x64xf32> to vector<4x32xf32>
    %126 = tpu.concatenate %124, %125 in 1 : vector<4x32xf32>, vector<4x32xf32> -> vector<4x64xf32>
    %127 = vector.extract_strided_slice %105 {offsets = [0, 0], sizes = [4, 32], strides = [1, 1]} : vector<4x64xf32> to vector<4x32xf32>
    %128 = vector.extract_strided_slice %77 {offsets = [0, 32], sizes = [4, 32], strides = [1, 1]} : vector<4x64xf32> to vector<4x32xf32>
    %129 = tpu.concatenate %127, %128 in 1 : vector<4x32xf32>, vector<4x32xf32> -> vector<4x64xf32>
    %130 = vector.shape_cast %108 : vector<4x64xf32> to vector<1x4x64xf32>
    %131 = vector.shape_cast %111 : vector<4x64xf32> to vector<1x4x64xf32>
    %132 = vector.shape_cast %114 : vector<4x64xf32> to vector<1x4x64xf32>
    %133 = vector.shape_cast %117 : vector<4x64xf32> to vector<1x4x64xf32>
    %134 = vector.shape_cast %120 : vector<4x64xf32> to vector<1x4x64xf32>
    %135 = vector.shape_cast %123 : vector<4x64xf32> to vector<1x4x64xf32>
    %136 = vector.shape_cast %126 : vector<4x64xf32> to vector<1x4x64xf32>
    %137 = vector.shape_cast %129 : vector<4x64xf32> to vector<1x4x64xf32>
    %138 = tpu.concatenate %130, %131, %132, %133, %134, %135, %136, %137 in 0 : vector<1x4x64xf32>, vector<1x4x64xf32>, vector<1x4x64xf32>, vector<1x4x64xf32>, vector<1x4x64xf32>, vector<1x4x64xf32>, vector<1x4x64xf32>, vector<1x4x64xf32> -> vector<8x4x64xf32>
    %c0_36 = arith.constant 0 : index
    %c0_37 = arith.constant 0 : index
    %c0_38 = arith.constant 0 : index
    %139 = vector.load %arg4[%c0_36, %c0_37, %c0_38] : memref<8x4x64xf32, #tpu.memory_space<vmem>>, vector<8x4x64xf32>
    tpu.vector_store %arg4[%c0_36, %c0_37, %c0_38], %138 {strides = array<i32>} : memref<8x4x64xf32, #tpu.memory_space<vmem>>, vector<8x4x64xf32>,
    %140 = vector.extract_strided_slice %105 {offsets = [0, 0], sizes = [4, 32], strides = [1, 1]} : vector<4x64xf32> to vector<4x32xf32>
    %141 = vector.extract_strided_slice %105 {offsets = [0, 32], sizes = [4, 32], strides = [1, 1]} : vector<4x64xf32> to vector<4x32xf32>
    %142 = vector.shape_cast %140 : vector<4x32xf32> to vector<1x4x32xf32>
    %143 = vector.shape_cast %141 : vector<4x32xf32> to vector<1x4x32xf32>
    %144 = tpu.concatenate %142, %143 in 0 : vector<1x4x32xf32>, vector<1x4x32xf32> -> vector<2x4x32xf32>
    %c0_39 = arith.constant 0 : index
    %c0_40 = arith.constant 0 : index
    %c0_41 = arith.constant 0 : index
    %145 = vector.load %arg5[%c0_39, %c0_40, %c0_41] : memref<2x4x32xf32, #tpu.memory_space<vmem>>, vector<2x4x32xf32>
    tpu.vector_store %arg5[%c0_39, %c0_40, %c0_41], %144 {strides = array<i32>} : memref<2x4x32xf32, #tpu.memory_space<vmem>>, vector<2x4x32xf32>,
    return
  }
}

</mosaic_0001>

<llo_original>
// kernel: encoder_forward.1
$region0: #{encoder_forward.1}
  #allocation0 [shape = 'u32[]', space=smem, size = 0x4, offset = 0x4, fixed_abs, tag = 'smem constant byte address 0x4 - core index']
  #allocation1 [shape = 'u32[72,128]{1,0:T(1,128)}', space=vmem, size = 0x9000, scoped, tag = 'internal scratch']
  %s0 = inlined_call_operand.vmem [shape: f32[8,4,32], index: 0, kind: input, shape index: {}]
  %s1 = inlined_call_operand.vmem [shape: f32[32,64], index: 1, kind: input, shape index: {}]
  %s2 = inlined_call_operand.vmem [shape: f32[64,64], index: 2, kind: input, shape index: {}]
  %s3 = inlined_call_operand.vmem [shape: f32[1,64], index: 3, kind: input, shape index: {}]
  %s4 = inlined_call_operand.hbm [shape: f32[8,4,64], index: 4, kind: output, shape index: {0}]
  %s5 = inlined_call_operand.hbm [shape: f32[2,4,32], index: 5, kind: output, shape index: {1}]
  %6 = xla_tuple %s4, %s5
  %s7 = sld [smem:[#allocation0]]
  $region34: #{encoder_forward.1} parent=0
    _
  %s9 = ssub.s32 1, %s7
  %s10 = scalar_select 0, %s9, %s7
  $region1: #{encoder_forward.1} parent=0
    #allocation2 [shape = 'u8[16384]{0}', space=vmem, size = 0x4000, scoped, tag = 'output window, operand 0, single buffered']
    #allocation3 [shape = 's32[1]{0}', space=sflag, size = 0x4, scoped, tag = 'scoped memory for encoder_forward.1']
    #allocation4 [shape = 'u8[4096]{0}', space=vmem, size = 0x1000, scoped, tag = 'output window, operand 1, single buffered']
    #allocation5 [shape = 's32[1]{0}', space=sflag, size = 0x4, scoped, tag = 'scoped memory for encoder_forward.1']
    %11 = vsyncpa [#allocation3], 0
    %12 = vsyncpa [#allocation5], 0
    // Predicated region
    $region2: #{encoder_forward.1} parent=1 // pred_check
      _
    $region3: #{encoder_forward.1} parent=1 // pred_check_branch
      %14 = sbr.rel (0) target = $region5
    $region4: #{encoder_forward.1} parent=1 // pred_region
      _
    $region5: #{encoder_forward.1} parent=1 // pred_fallthru
      _
    // Predicated region
    $region6: #{encoder_forward.1} parent=1 // pred_check
      _
    $region7: #{encoder_forward.1} parent=1 // pred_check_branch
      %16 = sbr.rel (0) target = $region9
    $region8: #{encoder_forward.1} parent=1 // pred_region
      _
    $region9: #{encoder_forward.1} parent=1 // pred_fallthru
      _
    // Predicated region
    $region10: #{encoder_forward.1} parent=1 // pred_check
      _
    $region11: #{encoder_forward.1} parent=1 // pred_check_branch
      %18 = sbr.rel (0) target = $region13
    $region12: #{encoder_forward.1} parent=1 // pred_region
      _
    $region13: #{encoder_forward.1} parent=1 // pred_fallthru
      _
    // Predicated region
    $region14: #{encoder_forward.1} parent=1 // pred_check
      _
    $region15: #{encoder_forward.1} parent=1 // pred_check_branch
      %20 = sbr.rel (0) target = $region17
    $region16: #{encoder_forward.1} parent=1 // pred_region
      _
    $region17: #{encoder_forward.1} parent=1 // pred_fallthru
      _
    %v22 = vld [vmem:[%s1] sm:$0xff]
    %v23 = vld [vmem:[%s1 + $0x8] sm:$0xff]
    %v24 = vld [vmem:[%s1 + $0x10] sm:$0xff]
    %v25 = vld [vmem:[%s1 + $0x18] sm:$0xff]
    %v26 = vpack.c.bf16 %v23, %v22
    %v27 = vpack.c.bf16 %v25, %v24
    %v28 = vld [vmem:[%s2] sm:$0xff]
    %v29 = vld [vmem:[%s2 + $0x8] sm:$0xff]
    %v30 = vld [vmem:[%s2 + $0x10] sm:$0xff]
    %v31 = vld [vmem:[%s2 + $0x18] sm:$0xff]
    %v32 = vld [vmem:[%s2 + $0x20] sm:$0xff]
    %v33 = vld [vmem:[%s2 + $0x28] sm:$0xff]
    %v34 = vld [vmem:[%s2 + $0x30] sm:$0xff]
    %v35 = vld [vmem:[%s2 + $0x38] sm:$0xff]
    %v36 = vpack.c.bf16 %v29, %v28
    %v37 = vpack.c.bf16 %v31, %v30
    %v38 = vpack.c.bf16 %v33, %v32
    %v39 = vpack.c.bf16 %v35, %v34
    %v40 = vld [vmem:[%s3] sm:$0x1]
    %v41 = vld [vmem:[%s0] sm:$0xf]
    %v42 = vpack.c.bf16 %v41, %v41
    %vm43 = vcmask 261120
    %v45 = vsel %vm43, %v42, 0
    %47 = vmatpush.bf16.msra.mxu0 0
    %48 = vmatpush.bf16.msra.mxu0 0
    %49 = vmatpush.bf16.msra.mxu0 0
    %50 = vmatpush.bf16.msra.mxu0 0
    %51 = vmatpush.bf16.msra.mxu0 0
    %52 = vmatpush.bf16.msra.mxu0 0
    %53 = vmatpush.bf16.msra.mxu0 %v27
    %54 = vmatpush.bf16.msra.mxu0 %v26
    %55 = vmatmul.bf16.gmra.mxu0 %v45
    %v56 = vpop.f32.mrf.mxu0
    %v57 = vadd.f32 0.0, %v56
    %v58 = vpop.f32.mrf.mxu0
    %59 = vdwg.mxu0
    %s60 = scalar_lea.vmem %s0, 4
    %v61 = vld [vmem:[%s60] sm:$0xf]
    %v62 = vpack.c.bf16 %v61, %v61
    %v64 = vsel %vm43, %v62, 0
    %66 = vmatpush.bf16.msra.mxu0 0
    %67 = vmatpush.bf16.msra.mxu0 0
    %68 = vmatpush.bf16.msra.mxu0 0
    %69 = vmatpush.bf16.msra.mxu0 0
    %70 = vmatpush.bf16.msra.mxu0 0
    %71 = vmatpush.bf16.msra.mxu0 0
    %72 = vmatpush.bf16.msra.mxu0 %v27
    %73 = vmatpush.bf16.msra.mxu0 %v26
    %74 = vmatmul.bf16.gmra.mxu0 %v64
    %v75 = vpop.f32.mrf.mxu0
    %v76 = vadd.f32 0.0, %v75
    %v77 = vpop.f32.mrf.mxu0
    %78 = vdwg.mxu0
    %s79 = scalar_lea.vmem %s0, 8
    %v80 = vld [vmem:[%s79] sm:$0xf]
    %v81 = vpack.c.bf16 %v80, %v80
    %v83 = vsel %vm43, %v81, 0
    %85 = vmatpush.bf16.msra.mxu0 0
    %86 = vmatpush.bf16.msra.mxu0 0
    %87 = vmatpush.bf16.msra.mxu0 0
    %88 = vmatpush.bf16.msra.mxu0 0
    %89 = vmatpush.bf16.msra.mxu0 0
    %90 = vmatpush.bf16.msra.mxu0 0
    %91 = vmatpush.bf16.msra.mxu0 %v27
    %92 = vmatpush.bf16.msra.mxu0 %v26
    %93 = vmatmul.bf16.gmra.mxu0 %v83
    %v94 = vpop.f32.mrf.mxu0
    %v95 = vadd.f32 0.0, %v94
    %v96 = vpop.f32.mrf.mxu0
    %97 = vdwg.mxu0
    %s98 = scalar_lea.vmem %s0, 12
    %v99 = vld [vmem:[%s98] sm:$0xf]
    %v100 = vpack.c.bf16 %v99, %v99
    %v102 = vsel %vm43, %v100, 0
    %104 = vmatpush.bf16.msra.mxu0 0
    %105 = vmatpush.bf16.msra.mxu0 0
    %106 = vmatpush.bf16.msra.mxu0 0
    %107 = vmatpush.bf16.msra.mxu0 0
    %108 = vmatpush.bf16.msra.mxu0 0
    %109 = vmatpush.bf16.msra.mxu0 0
    %110 = vmatpush.bf16.msra.mxu0 %v27
    %111 = vmatpush.bf16.msra.mxu0 %v26
    %112 = vmatmul.bf16.gmra.mxu0 %v102
    %v113 = vpop.f32.mrf.mxu0
    %v114 = vadd.f32 0.0, %v113
    %v115 = vpop.f32.mrf.mxu0
    %116 = vdwg.mxu0
    %s117 = scalar_lea.vmem %s0, 16
    %v118 = vld [vmem:[%s117] sm:$0xf]
    %v119 = vpack.c.bf16 %v118, %v118
    %v121 = vsel %vm43, %v119, 0
    %123 = vmatpush.bf16.msra.mxu0 0
    %124 = vmatpush.bf16.msra.mxu0 0
    %125 = vmatpush.bf16.msra.mxu0 0
    %126 = vmatpush.bf16.msra.mxu0 0
    %127 = vmatpush.bf16.msra.mxu0 0
    %128 = vmatpush.bf16.msra.mxu0 0
    %129 = vmatpush.bf16.msra.mxu0 %v27
    %130 = vmatpush.bf16.msra.mxu0 %v26
    %131 = vmatmul.bf16.gmra.mxu0 %v121
    %v132 = vpop.f32.mrf.mxu0
    %v133 = vadd.f32 0.0, %v132
    %v134 = vpop.f32.mrf.mxu0
    %135 = vdwg.mxu0
    %s136 = scalar_lea.vmem %s0, 20
    %v137 = vld [vmem:[%s136] sm:$0xf]
    %v138 = vpack.c.bf16 %v137, %v137
    %v140 = vsel %vm43, %v138, 0
    %142 = vmatpush.bf16.msra.mxu0 0
    %143 = vmatpush.bf16.msra.mxu0 0
    %144 = vmatpush.bf16.msra.mxu0 0
    %145 = vmatpush.bf16.msra.mxu0 0
    %146 = vmatpush.bf16.msra.mxu0 0
    %147 = vmatpush.bf16.msra.mxu0 0
    %148 = vmatpush.bf16.msra.mxu0 %v27
    %149 = vmatpush.bf16.msra.mxu0 %v26
    %150 = vmatmul.bf16.gmra.mxu0 %v140
    %v151 = vpop.f32.mrf.mxu0
    %v152 = vadd.f32 0.0, %v151
    %v153 = vpop.f32.mrf.mxu0
    %154 = vdwg.mxu0
    %s155 = scalar_lea.vmem %s0, 24
    %v156 = vld [vmem:[%s155] sm:$0xf]
    %v157 = vpack.c.bf16 %v156, %v156
    %v159 = vsel %vm43, %v157, 0
    %161 = vmatpush.bf16.msra.mxu0 0
    %162 = vmatpush.bf16.msra.mxu0 0
    %163 = vmatpush.bf16.msra.mxu0 0
    %164 = vmatpush.bf16.msra.mxu0 0
    %165 = vmatpush.bf16.msra.mxu0 0
    %166 = vmatpush.bf16.msra.mxu0 0
    %167 = vmatpush.bf16.msra.mxu0 %v27
    %168 = vmatpush.bf16.msra.mxu0 %v26
    %169 = vmatmul.bf16.gmra.mxu0 %v159
    %v170 = vpop.f32.mrf.mxu0
    %v171 = vadd.f32 0.0, %v170
    %v172 = vpop.f32.mrf.mxu0
    %173 = vdwg.mxu0
    %s174 = scalar_lea.vmem %s0, 28
    %v175 = vld [vmem:[%s174] sm:$0xf]
    %v176 = vpack.c.bf16 %v175, %v175
    %v178 = vsel %vm43, %v176, 0
    %180 = vmatpush.bf16.msra.mxu0 0
    %181 = vmatpush.bf16.msra.mxu0 0
    %182 = vmatpush.bf16.msra.mxu0 0
    %183 = vmatpush.bf16.msra.mxu0 0
    %184 = vmatpush.bf16.msra.mxu0 0
    %185 = vmatpush.bf16.msra.mxu0 0
    %186 = vmatpush.bf16.msra.mxu0 %v27
    %187 = vmatpush.bf16.msra.mxu0 %v26
    %188 = vmatmul.bf16.gmra.mxu0 %v178
    %v189 = vpop.f32.mrf.mxu0
    %v190 = vadd.f32 0.0, %v189
    %v191 = vpop.f32.mrf.mxu0
    %192 = vdwg.mxu0
    %v193 = vsel %vm43, %v57, %v190
    %v195 = vperm.slane %v40, 0
    %v197 = vadd.f32 %v193, %v195
    %v198 = vsel %vm43, %v76, %v171
    %v199 = vadd.f32 %v198, %v195
    %v200 = vsel %vm43, %v95, %v152
    %v201 = vadd.f32 %v200, %v195
    %v202 = vsel %vm43, %v114, %v133
    %v203 = vadd.f32 %v202, %v195
    %v204 = vsel %vm43, %v133, %v114
    %v205 = vadd.f32 %v204, %v195
    %v206 = vsel %vm43, %v152, %v95
    %v207 = vadd.f32 %v206, %v195
    %v208 = vsel %vm43, %v171, %v76
    %v209 = vadd.f32 %v208, %v195
    %v210 = vsel %vm43, %v190, %v57
    %v211 = vadd.f32 %v210, %v195
    %v212 = vtanh.pop %v197
    %v213 = vpack.c.bf16 %v212, %v212
    %vm214 = vcmask 523264
    %v216 = vsel %vm214, %v213, 0
    %218 = vmatpush.bf16.msra.mxu0 0
    %219 = vmatpush.bf16.msra.mxu0 0
    %220 = vmatpush.bf16.msra.mxu0 0
    %221 = vmatpush.bf16.msra.mxu0 0
    %222 = vmatpush.bf16.msra.mxu0 %v39
    %223 = vmatpush.bf16.msra.mxu0 %v38
    %224 = vmatpush.bf16.msra.mxu0 %v37
    %225 = vmatpush.bf16.msra.mxu0 %v36
    %226 = vmatmul.bf16.gmra.mxu0 %v216
    %v227 = vpop.f32.mrf.mxu0
    %v228 = vadd.f32 0.0, %v227
    %v229 = vpop.f32.mrf.mxu0
    %230 = vdwg.mxu0
    %v231 = vadd.f32 %v199, %v228
    %v232 = vtanh.pop %v231
    %v233 = vpack.c.bf16 %v232, %v232
    %v235 = vsel %vm214, %v233, 0
    %237 = vmatpush.bf16.msra.mxu0 0
    %238 = vmatpush.bf16.msra.mxu0 0
    %239 = vmatpush.bf16.msra.mxu0 0
    %240 = vmatpush.bf16.msra.mxu0 0
    %241 = vmatpush.bf16.msra.mxu0 %v39
    %242 = vmatpush.bf16.msra.mxu0 %v38
    %243 = vmatpush.bf16.msra.mxu0 %v37
    %244 = vmatpush.bf16.msra.mxu0 %v36
    %245 = vmatmul.bf16.gmra.mxu0 %v235
    %v246 = vpop.f32.mrf.mxu0
    %v247 = vadd.f32 0.0, %v246
    %v248 = vpop.f32.mrf.mxu0
    %249 = vdwg.mxu0
    %v250 = vadd.f32 %v201, %v247
    %v251 = vtanh.pop %v250
    %v252 = vpack.c.bf16 %v251, %v251
    %v254 = vsel %vm214, %v252, 0
    %256 = vmatpush.bf16.msra.mxu0 0
    %257 = vmatpush.bf16.msra.mxu0 0
    %258 = vmatpush.bf16.msra.mxu0 0
    %259 = vmatpush.bf16.msra.mxu0 0
    %260 = vmatpush.bf16.msra.mxu0 %v39
    %261 = vmatpush.bf16.msra.mxu0 %v38
    %262 = vmatpush.bf16.msra.mxu0 %v37
    %263 = vmatpush.bf16.msra.mxu0 %v36
    %264 = vmatmul.bf16.gmra.mxu0 %v254
    %v265 = vpop.f32.mrf.mxu0
    %v266 = vadd.f32 0.0, %v265
    %v267 = vpop.f32.mrf.mxu0
    %268 = vdwg.mxu0
    %v269 = vadd.f32 %v203, %v266
    %v270 = vtanh.pop %v269
    %v271 = vpack.c.bf16 %v270, %v270
    %v273 = vsel %vm214, %v271, 0
    %275 = vmatpush.bf16.msra.mxu0 0
    %276 = vmatpush.bf16.msra.mxu0 0
    %277 = vmatpush.bf16.msra.mxu0 0
    %278 = vmatpush.bf16.msra.mxu0 0
    %279 = vmatpush.bf16.msra.mxu0 %v39
    %280 = vmatpush.bf16.msra.mxu0 %v38
    %281 = vmatpush.bf16.msra.mxu0 %v37
    %282 = vmatpush.bf16.msra.mxu0 %v36
    %283 = vmatmul.bf16.gmra.mxu0 %v273
    %v284 = vpop.f32.mrf.mxu0
    %v285 = vadd.f32 0.0, %v284
    %v286 = vpop.f32.mrf.mxu0
    %287 = vdwg.mxu0
    %v288 = vadd.f32 %v205, %v285
    %v289 = vtanh.pop %v288
    %v290 = vpack.c.bf16 %v289, %v289
    %v292 = vsel %vm214, %v290, 0
    %294 = vmatpush.bf16.msra.mxu0 0
    %295 = vmatpush.bf16.msra.mxu0 0
    %296 = vmatpush.bf16.msra.mxu0 0
    %297 = vmatpush.bf16.msra.mxu0 0
    %298 = vmatpush.bf16.msra.mxu0 %v39
    %299 = vmatpush.bf16.msra.mxu0 %v38
    %300 = vmatpush.bf16.msra.mxu0 %v37
    %301 = vmatpush.bf16.msra.mxu0 %v36
    %302 = vmatmul.bf16.gmra.mxu0 %v292
    %v303 = vpop.f32.mrf.mxu0
    %v304 = vadd.f32 0.0, %v303
    %v305 = vpop.f32.mrf.mxu0
    %306 = vdwg.mxu0
    %v307 = vadd.f32 %v207, %v304
    %v308 = vtanh.pop %v307
    %v309 = vpack.c.bf16 %v308, %v308
    %v311 = vsel %vm214, %v309, 0
    %313 = vmatpush.bf16.msra.mxu0 0
    %314 = vmatpush.bf16.msra.mxu0 0
    %315 = vmatpush.bf16.msra.mxu0 0
    %316 = vmatpush.bf16.msra.mxu0 0
    %317 = vmatpush.bf16.msra.mxu0 %v39
    %318 = vmatpush.bf16.msra.mxu0 %v38
    %319 = vmatpush.bf16.msra.mxu0 %v37
    %320 = vmatpush.bf16.msra.mxu0 %v36
    %321 = vmatmul.bf16.gmra.mxu0 %v311
    %v322 = vpop.f32.mrf.mxu0
    %v323 = vadd.f32 0.0, %v322
    %v324 = vpop.f32.mrf.mxu0
    %325 = vdwg.mxu0
    %v326 = vadd.f32 %v209, %v323
    %v327 = vtanh.pop %v326
    %v328 = vpack.c.bf16 %v327, %v327
    %v330 = vsel %vm214, %v328, 0
    %332 = vmatpush.bf16.msra.mxu0 0
    %333 = vmatpush.bf16.msra.mxu0 0
    %334 = vmatpush.bf16.msra.mxu0 0
    %335 = vmatpush.bf16.msra.mxu0 0
    %336 = vmatpush.bf16.msra.mxu0 %v39
    %337 = vmatpush.bf16.msra.mxu0 %v38
    %338 = vmatpush.bf16.msra.mxu0 %v37
    %339 = vmatpush.bf16.msra.mxu0 %v36
    %340 = vmatmul.bf16.gmra.mxu0 %v330
    %v341 = vpop.f32.mrf.mxu0
    %v342 = vadd.f32 0.0, %v341
    %v343 = vpop.f32.mrf.mxu0
    %344 = vdwg.mxu0
    %v345 = vadd.f32 %v211, %v342
    %v346 = vtanh.pop %v345
    %v347 = vsel %vm43, %v212, %v346
    %v348 = vsel %vm43, %v232, %v327
    %v349 = vsel %vm43, %v251, %v308
    %v350 = vsel %vm43, %v270, %v289
    %v351 = vsel %vm43, %v289, %v270
    %v352 = vsel %vm43, %v308, %v251
    %v353 = vsel %vm43, %v327, %v232
    %v354 = vsel %vm43, %v346, %v212
    %vm355 = vcmask 519168
    %356 = vst.msk [vmem:[#allocation2] sm:$0xf] %vm355, %v347
    %357 = vst.msk [vmem:[#allocation2 + $0x4] sm:$0xf] %vm355, %v348
    %358 = vst.msk [vmem:[#allocation2 + $0x8] sm:$0xf] %vm355, %v349
    %359 = vst.msk [vmem:[#allocation2 + $0xc] sm:$0xf] %vm355, %v350
    %360 = vst.msk [vmem:[#allocation2 + $0x10] sm:$0xf] %vm355, %v351
    %361 = vst.msk [vmem:[#allocation2 + $0x14] sm:$0xf] %vm355, %v352
    %362 = vst.msk [vmem:[#allocation2 + $0x18] sm:$0xf] %vm355, %v353
    %363 = vst.msk [vmem:[#allocation2 + $0x1c] sm:$0xf] %vm355, %v354
    %365 = vrot.lane.b32.xlu0 %v346, 96
    %v366 = vpop.permute.xlu0 %365
    %vm368 = vcmask 257024
    %369 = vst.msk [vmem:[#allocation4] sm:$0xf] %vm368, %v346
    %370 = vst.msk [vmem:[#allocation4 + $0x4] sm:$0xf] %vm368, %v366
    // Predicated region
    $region18: #{encoder_forward.1} parent=1 // pred_check
      _
    $region19: #{encoder_forward.1} parent=1 // pred_check_branch
      %372 = sbr.rel (0) target = $region21
    $region20: #{encoder_forward.1} parent=1 // pred_region
      %374 = vsyncadd [#allocation3], 0
      %s375 = sshll.u32 [#allocation2], 4
      %s376 = int_to_ptr.vmem [resolvable:$true] %s375
      %s377 = sshll.u32 %s4, 4
      %s378 = int_to_ptr.hbm [resolvable:$true] %s377
      %383 = dma.vmem_to_hbm [thread:$0]  %s376, 512, %s378, [#allocation3], 64, 64, 4
    $region21: #{encoder_forward.1} parent=1 // pred_fallthru
      _
    // Predicated region
    $region22: #{encoder_forward.1} parent=1 // pred_check
      _
    $region23: #{encoder_forward.1} parent=1 // pred_check_branch
      %385 = sbr.rel (0) target = $region25
    $region24: #{encoder_forward.1} parent=1 // pred_region
      %387 = vsyncadd [#allocation5], 0
      %s388 = sshll.u32 [#allocation4], 4
      %s389 = int_to_ptr.vmem [resolvable:$true] %s388
      %s390 = sshll.u32 %s5, 4
      %s391 = int_to_ptr.hbm [resolvable:$true] %s390
      %396 = dma.vmem_to_hbm [thread:$0]  %s389, 128, %s391, [#allocation5], 64, 64, 4
    $region25: #{encoder_forward.1} parent=1 // pred_fallthru
      _
    // Predicated region
    $region26: #{encoder_forward.1} parent=1 // pred_check
      _
    $region27: #{encoder_forward.1} parent=1 // pred_check_branch
      %398 = sbr.rel (0) target = $region29
    $region28: #{encoder_forward.1} parent=1 // pred_region
      %400 = dma.done [#allocation3], 512
    $region29: #{encoder_forward.1} parent=1 // pred_fallthru
      _
    // Predicated region
    $region30: #{encoder_forward.1} parent=1 // pred_check
      _
    $region31: #{encoder_forward.1} parent=1 // pred_check_branch
      %402 = sbr.rel (0) target = $region33
    $region32: #{encoder_forward.1} parent=1 // pred_region
      %404 = dma.done [#allocation5], 128
    $region33: #{encoder_forward.1} parent=1 // pred_fallthru
      _
    %405 = vsyncpa [#allocation3], 1
    %406 = vsyncpa [#allocation5], 1

</llo_original>
